<compile_context>
chip_gen: v7x
topology: tpu7x:2x2x1
jax: 0.10.0
libtpu: 0.0.40
codegen_flags: <defaults>
</compile_context>

<pallas_src>
import jax
import jax.numpy as jnp
from jax.experimental import pallas as pl
from jax.experimental.pallas import tpu as pltpu

_LANE = 128
_TM_MAX = 512
_TN_MAX = 512
_TK_MAX = 512
_SINGLE_BLOCK_BYTES = 16 * 1024 * 1024  # comfortable vs every generation's VMEM


def _round_up(x, m):
    return ((x + m - 1) // m) * m


def _sublane_multiple(dtype):
    # sub-32-bit dtypes pack along sublanes: 16 rows for bf16, 32 for int8/fp8.
    return {1: 32, 2: 16, 4: 8}.get(jnp.dtype(dtype).itemsize, 8)


def _pick_tile(padded, tmax):
    """Largest 'nice' tile (multiple of 128, 256-aligned preferred) dividing `padded`."""
    if padded <= tmax:
        return padded
    for cand in (512, 256, 384, 128):  # 256-aligned first (v6e/v7x 2x256 MXU)
        if cand <= tmax and padded % cand == 0:
            return cand
    cand = (tmax // _LANE) * _LANE
    while cand > _LANE:
        if padded % cand == 0:
            return cand
        cand -= _LANE
    return _LANE


def _plan_nk(C, D, tn_max=_TN_MAX, tk_max=_TK_MAX):
    Cp = _round_up(C, _LANE)
    Dp = _round_up(D, _LANE)
    return Cp, Dp, _pick_tile(Cp, tn_max), _pick_tile(Dp, tk_max)


def prepare_class_block_weight(weight, *, mxu_dtype=jnp.bfloat16,
                               tn_max=_TN_MAX, tk_max=_TK_MAX):
    """One-time (cacheable) weight prep: cast + zero-pad + transpose -> (Dp, Cp)."""
    C, D = weight.shape
    Cp, Dp, _, _ = _plan_nk(C, D, tn_max, tk_max)
    w = weight.astype(mxu_dtype) if weight.dtype != jnp.dtype(mxu_dtype) else weight
    if (Cp, Dp) != (C, D):
        w = jnp.pad(w, ((0, Cp - C), (0, Dp - D)))
    return w.T  # (Dp, Cp) — canonical MXU feed layout


# ---------------------------------------------------------------------------
# Kernels
# ---------------------------------------------------------------------------
def _single_block_kernel(x_ref, w_ref, o_ref):
    # Whole problem resident in VMEM: one MXU pass, no init/finalize machinery.
    o_ref[...] = jnp.dot(x_ref[...], w_ref[...],
                         preferred_element_type=jnp.float32).astype(o_ref.dtype)


def _tiled_kernel_f32_out(x_ref, w_ref, o_ref):
    # f32 output: accumulate directly into the VMEM-resident output block.
    @pl.when(pl.program_id(2) == 0)
    def _():
        o_ref[...] = jnp.zeros_like(o_ref)

    o_ref[...] += jnp.dot(x_ref[...], w_ref[...],
                          preferred_element_type=jnp.float32)


def _tiled_kernel_acc(x_ref, w_ref, o_ref, acc_ref):
    # Low-precision output: f32 scratch accumulator + epilogue cast.
    k = pl.program_id(2)

    @pl.when(k == 0)
    def _():
        acc_ref[...] = jnp.zeros_like(acc_ref)

    acc_ref[...] += jnp.dot(x_ref[...], w_ref[...],
                            preferred_element_type=jnp.float32)

    @pl.when(k == pl.num_programs(2) - 1)
    def _():
        o_ref[...] = acc_ref[...].astype(o_ref.dtype)


def _weight_spec(tk, tn, grid_k):
    index_map = lambda i, j, k: (k, j)
    if grid_k >= 4 and hasattr(pl, "Buffered"):
        try:  # deeper weight-stream buffering hides K-axis DMA latency (v5e)
            return pl.BlockSpec((tk, tn), index_map,
                                pipeline_mode=pl.Buffered(3)), 3
        except TypeError:
            pass
    return pl.BlockSpec((tk, tn), index_map), 2


# ---------------------------------------------------------------------------
# Forward
# ---------------------------------------------------------------------------
def class_block_forward(x, weight, prepared_weight=None, *,
                        mxu_dtype=jnp.bfloat16,
                        tm_max=_TM_MAX, tn_max=_TN_MAX, tk_max=_TK_MAX):
    """Pallas equivalent of ClassBlock.forward: returns (x @ weight.T, weight)."""
    B, D = x.shape
    C, Dw = weight.shape
    assert D == Dw, "input_dim mismatch"
    out_dtype = x.dtype

    if prepared_weight is not None:
        mxu_dtype = prepared_weight.dtype
    Cp, Dp, tn, tk = _plan_nk(C, D, tn_max, tk_max)
    if prepared_weight is None:
        prepared_weight = prepare_class_block_weight(
            weight, mxu_dtype=mxu_dtype, tn_max=tn_max, tk_max=tk_max)
    assert prepared_weight.shape == (Dp, Cp)

    mxu_sz = jnp.dtype(mxu_dtype).itemsize
    out_sz = jnp.dtype(out_dtype).itemsize

    sub = _sublane_multiple(mxu_dtype)
    Bp_min = _round_up(B, sub)

    # Single-block fast path: padded operands (double-buffered) fit VMEM.
    full_bytes = 2 * (Bp_min * Dp * mxu_sz + Dp * Cp * mxu_sz + Bp_min * Cp * out_sz)
    single = (full_bytes <= _SINGLE_BLOCK_BYTES) and (Bp_min <= 1024)

    if single:
        tm, tn, tk = Bp_min, Cp, Dp
        Bp = Bp_min
        grid = (1, 1, 1)
    else:
        tm = Bp_min if Bp_min <= tm_max else tm_max
        Bp = _round_up(B, tm)
        grid_m, grid_n, grid_k = Bp // tm, Cp // tn, Dp // tk
        # v7x: guarantee >= 2 parallel (M, N) blocks so the 2nd TensorCore has
        # work when the parallel grid axes are sharded across cores.
        if grid_m * grid_n == 1 and Cp >= 256 and Cp % 256 == 0:
            tn = Cp // 2
            grid_n = 2
        grid = (grid_m, grid_n, grid_k)

    # Prepare x: cast first (half the bytes), then a single pad copy.
    x_p = x.astype(mxu_dtype) if x.dtype != jnp.dtype(mxu_dtype) else x
    if (Bp, Dp) != (B, D):
        x_p = jnp.pad(x_p, ((0, Bp - B), (0, Dp - D)))

    in_specs = [pl.BlockSpec((tm, tk), lambda i, j, k: (i, k))]
    if single:
        kernel = _single_block_kernel
        scratch_shapes = []
        w_spec, n_w_buf = pl.BlockSpec((tk, tn), lambda i, j, k: (k, j)), 2
    else:
        w_spec, n_w_buf = _weight_spec(tk, tn, grid[2])
        if out_dtype == jnp.float32:
            kernel = _tiled_kernel_f32_out
            scratch_shapes = []
        else:
            kernel = _tiled_kernel_acc
            scratch_shapes = [pltpu.VMEM((tm, tn), jnp.float32)]
    in_specs.append(w_spec)

    # Explicit VMEM budget derived from the tile footprint (v7x physical = 64 MiB).
    vmem_est = (2 * tm * tk * mxu_sz + n_w_buf * tk * tn * mxu_sz
                + 2 * tm * tn * out_sz + (tm * tn * 4 if scratch_shapes else 0))
    vmem_limit = int(min(64 * 2**20, max(32 * 2**20, 2 * vmem_est + (4 << 20))))

    cost = pl.CostEstimate(
        flops=2 * B * C * D,
        transcendentals=0,
        bytes_accessed=(x_p.size * mxu_sz + prepared_weight.size * mxu_sz
                        + Bp * Cp * out_sz),
    )

    out_p = pl.pallas_call(
        kernel,
        out_shape=jax.ShapeDtypeStruct((Bp, Cp), out_dtype),
        grid=grid,
        in_specs=in_specs,
        out_specs=pl.BlockSpec((tm, tn), lambda i, j, k: (i, j)),
        scratch_shapes=scratch_shapes,
        compiler_params=pltpu.CompilerParams(
            dimension_semantics=("parallel", "parallel", "arbitrary"),
            vmem_limit_bytes=vmem_limit,
        ),
        cost_estimate=cost,
    )(x_p, prepared_weight)

    out = out_p[:B, :C]
    return out, weight


class ClassBlock:
    """JAX/Pallas port of the PyTorch ClassBlock (bias-free linear classifier)."""

    def __init__(self, input_dim, class_num, *, key, mxu_dtype=jnp.bfloat16):
        # nn.init.normal_(weight, 0, 0.001)
        self.weight = 0.001 * jax.random.normal(
            key, (class_num, input_dim), dtype=jnp.float32)
        # Parameter prep (cast + pad + transpose) happens ONCE, not per forward.
        self._prepared = prepare_class_block_weight(self.weight,
                                                    mxu_dtype=mxu_dtype)

    def __call__(self, x):
        return class_block_forward(x, self.weight, prepared_weight=self._prepared)


if __name__ == "__main__":
    key = jax.random.PRNGKey(0)
    k_x, k_w = jax.random.split(key)

    batch, input_dim, class_num = 8, 32, 16

    block = ClassBlock(input_dim, class_num, key=k_w)
    x = jax.random.normal(k_x, (batch, input_dim), dtype=jnp.float32)

    out, w_out = block(x)
    jax.block_until_ready(out)
    jax.block_until_ready(w_out)

    ref = x @ block.weight.T
    assert out.shape == (batch, class_num)
    assert w_out.shape == (class_num, input_dim)
    # Default path: bf16 MXU feed with f32 accumulation (classifier-head tol).
    assert jnp.allclose(out, ref, atol=1e-3, rtol=1e-2), \
        float(jnp.max(jnp.abs(out - ref)))

    # Exact-semantics path: full-f32 MXU feed, tight tolerance.
    out_f32, _ = class_block_forward(x, block.weight, mxu_dtype=jnp.float32)
    jax.block_until_ready(out_f32)
    assert jnp.allclose(out_f32, ref, atol=1e-5, rtol=1e-5)

    print("KERNEL_OK")
</pallas_src>

<mosaic_0001>
module attributes {stable_mosaic.version = 11 : i64} {
  func.func @_single_block_kernel(%arg0: i32, %arg1: i32, %arg2: i32, %arg3: memref<16x128xbf16, #tpu.memory_space<vmem>>, %arg4: memref<128x128xbf16, #tpu.memory_space<vmem>>, %arg5: memref<16x128xf32, #tpu.memory_space<vmem>>) attributes {dimension_semantics = [#tpu.dimension_semantics<parallel>, #tpu.dimension_semantics<parallel>, #tpu.dimension_semantics<arbitrary>], iteration_bounds = array<i64: 1, 1, 1>, scalar_prefetch = 0 : i64, scratch_operands = 0 : i64, tpu.core_type = #tpu.core_type<tc>, window_params = [{transform_indices = @transform_0, window_bounds = array<i64: 16, 128>}, {transform_indices = @transform_1, window_bounds = array<i64: 128, 128>}, {transform_indices = @transform_2, window_bounds = array<i64: 16, 128>}]} {
    %c0 = arith.constant 0 : index
    %c0_0 = arith.constant 0 : index
    %0 = vector.load %arg3[%c0, %c0_0] : memref<16x128xbf16, #tpu.memory_space<vmem>>, vector<16x128xbf16>
    %c0_1 = arith.constant 0 : index
    %c0_2 = arith.constant 0 : index
    %1 = vector.load %arg4[%c0_1, %c0_2] : memref<128x128xbf16, #tpu.memory_space<vmem>>, vector<128x128xbf16>
    %cst = arith.constant dense<0.000000e+00> : vector<16x128xf32>
    %2 = tpu.matmul %0, %1, %cst {dimension_numbers = #tpu.dot_dimension_numbers<[1], [0], [0], [1], [0, 0, 1, 1], [], []>} : vector<16x128xbf16>, vector<128x128xbf16>, vector<16x128xf32> -> vector<16x128xf32>
    %c0_3 = arith.constant 0 : index
    %c0_4 = arith.constant 0 : index
    %3 = vector.load %arg5[%c0_3, %c0_4] : memref<16x128xf32, #tpu.memory_space<vmem>>, vector<16x128xf32>
    tpu.vector_store %arg5[%c0_3, %c0_4], %2 {strides = array<i32>} : memref<16x128xf32, #tpu.memory_space<vmem>>, vector<16x128xf32>,
    return
  }
  func.func @transform_0(%arg0: i32, %arg1: i32, %arg2: i32) -> (i32, i32) {
    %c0_i32 = arith.constant 0 : i32
    return %arg0, %arg2 : i32, i32
  }
  func.func @transform_1(%arg0: i32, %arg1: i32, %arg2: i32) -> (i32, i32) {
    %c0_i32 = arith.constant 0 : i32
    return %arg2, %arg1 : i32, i32
  }
  func.func @transform_2(%arg0: i32, %arg1: i32, %arg2: i32) -> (i32, i32) {
    %c0_i32 = arith.constant 0 : i32
    return %arg0, %arg1 : i32, i32
  }
}

</mosaic_0001>

<llo_original>
// kernel: tpu_custom_call.1
$region0: #{tpu_custom_call.1}
  #allocation0 [shape = 'u32[]', space=smem, size = 0x4, offset = 0x4, fixed_abs, tag = 'smem constant byte address 0x4 - core index']
  #allocation1 [shape = 'u32[144,128]{1,0:T(1,128)}', space=vmem, size = 0x12000, scoped, tag = 'internal scratch']
  %s0 = inlined_call_operand.hbm [shape: bf16[16,128], index: 0, kind: input, shape index: {}]
  %s1 = inlined_call_operand.hbm [shape: bf16[128,128], index: 1, kind: input, shape index: {}]
  %s2 = inlined_call_operand.hbm [shape: f32[16,128], index: 2, kind: output, shape index: {}]
  %s3 = sld [smem:[#allocation0]]
  $region26: #{tpu_custom_call.1} parent=0
    _
  %s5 = ssub.s32 1, %s3
  %s6 = scalar_select 0, %s5, %s3
  $region1: #{tpu_custom_call.1} parent=0
    #allocation2 [shape = 'u8[4096]{0}', space=vmem, size = 0x1000, scoped, tag = 'input window, operand 0, single buffered']
    #allocation3 [shape = 's32[1]{0}', space=sflag, size = 0x4, scoped, tag = 'scoped memory for tpu_custom_call.1']
    #allocation4 [shape = 's32[1]{0}', space=sflag, size = 0x4, scoped, tag = 'scoped memory for tpu_custom_call.1']
    #allocation5 [shape = 'u8[32768]{0}', space=vmem, size = 0x8000, scoped, tag = 'input window, operand 1, single buffered']
    #allocation6 [shape = 's32[1]{0}', space=sflag, size = 0x4, scoped, tag = 'scoped memory for tpu_custom_call.1']
    #allocation7 [shape = 'u8[8192]{0}', space=vmem, size = 0x2000, scoped, tag = 'output window, operand 0, single buffered']
    %7 = vsyncpa [#allocation3], 0
    %8 = vsyncpa [#allocation6], 0
    %9 = vsyncpa [#allocation4], 0
    // Predicated region
    $region2: #{tpu_custom_call.1} parent=1 // pred_check
      _
    $region3: #{tpu_custom_call.1} parent=1 // pred_check_branch
      %11 = sbr.rel (0) target = $region5
    $region4: #{tpu_custom_call.1} parent=1 // pred_region
      %s13 = ssub.s32 128, 128
      %14 = vsyncadd [#allocation3], %s13
      %s15 = sshll.u32 [#allocation2], 4
      %s16 = int_to_ptr.vmem [resolvable:$true] %s15
      %21 = dma.hbm_to_vmem [thread:$0]  %s0, 128, %s16, [#allocation3], 64, 64, 4
    $region5: #{tpu_custom_call.1} parent=1 // pred_fallthru
      _
    // Predicated region
    $region6: #{tpu_custom_call.1} parent=1 // pred_check
      _
    $region7: #{tpu_custom_call.1} parent=1 // pred_check_branch
      %23 = sbr.rel (0) target = $region9
    $region8: #{tpu_custom_call.1} parent=1 // pred_region
      %s25 = ssub.s32 1024, 1024
      %26 = vsyncadd [#allocation6], %s25
      %s27 = sshll.u32 [#allocation5], 4
      %s28 = int_to_ptr.vmem [resolvable:$true] %s27
      %33 = dma.hbm_to_vmem [thread:$0]  %s1, 1024, %s28, [#allocation6], 64, 64, 4
    $region9: #{tpu_custom_call.1} parent=1 // pred_fallthru
      _
    // Predicated region
    $region10: #{tpu_custom_call.1} parent=1 // pred_check
      _
    $region11: #{tpu_custom_call.1} parent=1 // pred_check_branch
      %35 = sbr.rel (0) target = $region13
    $region12: #{tpu_custom_call.1} parent=1 // pred_region
      %36 = dma.done [#allocation3], 128
    $region13: #{tpu_custom_call.1} parent=1 // pred_fallthru
      _
    // Predicated region
    $region14: #{tpu_custom_call.1} parent=1 // pred_check
      _
    $region15: #{tpu_custom_call.1} parent=1 // pred_check_branch
      %38 = sbr.rel (0) target = $region17
    $region16: #{tpu_custom_call.1} parent=1 // pred_region
      %39 = dma.done [#allocation6], 1024
    $region17: #{tpu_custom_call.1} parent=1 // pred_fallthru
      _
    %v41 = vld [vmem:[#allocation2] sm:$0xf]
    %v42 = vld [vmem:[#allocation2 + $0x4] sm:$0xf]
    %v43 = vld [vmem:[#allocation5] sm:$0xf]
    %v44 = vld [vmem:[#allocation5 + $0x4] sm:$0xf]
    %v45 = vld [vmem:[#allocation5 + $0x8] sm:$0xf]
    %v46 = vld [vmem:[#allocation5 + $0xc] sm:$0xf]
    %v47 = vld [vmem:[#allocation5 + $0x10] sm:$0xf]
    %v48 = vld [vmem:[#allocation5 + $0x14] sm:$0xf]
    %v49 = vld [vmem:[#allocation5 + $0x18] sm:$0xf]
    %v50 = vld [vmem:[#allocation5 + $0x1c] sm:$0xf]
    %v51 = vld [vmem:[#allocation5 + $0x20] sm:$0xf]
    %v52 = vld [vmem:[#allocation5 + $0x24] sm:$0xf]
    %v53 = vld [vmem:[#allocation5 + $0x28] sm:$0xf]
    %v54 = vld [vmem:[#allocation5 + $0x2c] sm:$0xf]
    %v55 = vld [vmem:[#allocation5 + $0x30] sm:$0xf]
    %v56 = vld [vmem:[#allocation5 + $0x34] sm:$0xf]
    %v57 = vld [vmem:[#allocation5 + $0x38] sm:$0xf]
    %v58 = vld [vmem:[#allocation5 + $0x3c] sm:$0xf]
    %v61 = vunpack.c.l.b16 %v41
    %v62 = vunpack.c.l.b16 %v42
    %v63 = vpack.c.b16 %v62, %v61
    %v81 = vunpack.c.l.b16 %v43
    %v82 = vunpack.c.l.b16 %v44
    %v83 = vunpack.c.l.b16 %v45
    %v84 = vunpack.c.l.b16 %v46
    %v85 = vunpack.c.l.b16 %v47
    %v86 = vunpack.c.l.b16 %v48
    %v87 = vunpack.c.l.b16 %v49
    %v88 = vunpack.c.l.b16 %v50
    %v89 = vunpack.c.l.b16 %v51
    %v90 = vunpack.c.l.b16 %v52
    %v91 = vunpack.c.l.b16 %v53
    %v92 = vunpack.c.l.b16 %v54
    %v93 = vunpack.c.l.b16 %v55
    %v94 = vunpack.c.l.b16 %v56
    %v95 = vunpack.c.l.b16 %v57
    %v96 = vunpack.c.l.b16 %v58
    %v97 = vpack.c.b16 %v82, %v81
    %v98 = vpack.c.b16 %v84, %v83
    %v99 = vpack.c.b16 %v86, %v85
    %v100 = vpack.c.b16 %v88, %v87
    %v101 = vpack.c.b16 %v90, %v89
    %v102 = vpack.c.b16 %v92, %v91
    %v103 = vpack.c.b16 %v94, %v93
    %v104 = vpack.c.b16 %v96, %v95
    %113 = vmatprep.subr.bf16.mxu0 0
    %114 = vmatpush1.bf16.msra.mxu0 %v97
    %115 = vmatprep.subr.bf16.mxu0 0
    %116 = vmatpush1.bf16.msra.mxu0 %v98
    %117 = vmatprep.subr.bf16.mxu0 0
    %118 = vmatpush1.bf16.msra.mxu0 %v99
    %119 = vmatprep.subr.bf16.mxu0 0
    %120 = vmatpush1.bf16.msra.mxu0 %v100
    %121 = vmatprep.subr.bf16.mxu0 0
    %122 = vmatpush1.bf16.msra.mxu0 %v101
    %123 = vmatprep.subr.bf16.mxu0 0
    %124 = vmatpush1.bf16.msra.mxu0 %v102
    %125 = vmatprep.subr.bf16.mxu0 0
    %126 = vmatpush1.bf16.msra.mxu0 %v103
    %127 = vmatprep.subr.bf16.mxu0 0
    %128 = vmatpush1.bf16.msra.mxu0 %v104
    %129 = vmatprep.subr.bf16.mxu0 0
    %130 = vmatpush1.bf16.msra.mxu0 0
    %131 = vmatprep.subr.bf16.mxu0 0
    %132 = vmatpush1.bf16.msra.mxu0 0
    %133 = vmatprep.subr.bf16.mxu0 0
    %134 = vmatpush1.bf16.msra.mxu0 0
    %135 = vmatprep.subr.bf16.mxu0 0
    %136 = vmatpush1.bf16.msra.mxu0 0
    %137 = vmatprep.subr.bf16.mxu0 0
    %138 = vmatpush1.bf16.msra.mxu0 0
    %139 = vmatprep.subr.bf16.mxu0 0
    %140 = vmatpush1.bf16.msra.mxu0 0
    %141 = vmatprep.subr.bf16.mxu0 0
    %142 = vmatpush1.bf16.msra.mxu0 0
    %143 = vmatprep.subr.bf16.mxu0 0
    %144 = vmatpush1.bf16.msra.mxu0 0
    %145 = vmatprep.mubr.bf16.mxu0 0
    %146 = vmatmul.mubr.bf16.gmra.mrb[0].mxu0 %v63
    %v147 = vpop.f32.mrb[0].mxu0
    %v148 = vadd.f32 0.0, %v147
    %v149 = vpop.f32.mrb[0].mxu0
    %v150 = vpop.f32.mrb[0].mxu0
    %v151 = vadd.f32 0.0, %v150
    %v152 = vpop.f32.mrb[0].mxu0
    %153 = vdwg.mxu0
    %154 = vst [vmem:[#allocation7] sm:$0xff] %v148
    %155 = vst [vmem:[#allocation7 + $0x8] sm:$0xff] %v151
    // Predicated region
    $region18: #{tpu_custom_call.1} parent=1 // pred_check
      _
    $region19: #{tpu_custom_call.1} parent=1 // pred_check_branch
      %157 = sbr.rel (0) target = $region21
    $region20: #{tpu_custom_call.1} parent=1 // pred_region
      %s159 = ssub.s32 256, 256
      %160 = vsyncadd [#allocation4], %s159
      %s161 = sshll.u32 [#allocation7], 4
      %s162 = int_to_ptr.vmem [resolvable:$true] %s161
      %167 = dma.vmem_to_hbm [thread:$0]  %s162, 256, %s2, [#allocation4], 128, 128, 8
    $region21: #{tpu_custom_call.1} parent=1 // pred_fallthru
      _
    // Predicated region
    $region22: #{tpu_custom_call.1} parent=1 // pred_check
      _
    $region23: #{tpu_custom_call.1} parent=1 // pred_check_branch
      %169 = sbr.rel (0) target = $region25
    $region24: #{tpu_custom_call.1} parent=1 // pred_region
      %170 = dma.done [#allocation4], 256
    $region25: #{tpu_custom_call.1} parent=1 // pred_fallthru
      _
    %171 = vsyncpa [#allocation3], 1
    %172 = vsyncpa [#allocation6], 1
    %173 = vsyncpa [#allocation4], 1

</llo_original>
